<compile_context>
chip_gen: v6e
topology: v6e:2x2x1
jax: 0.10.0
libtpu: 0.0.40
codegen_flags: <defaults>
</compile_context>

<pallas_src>
import functools
import math

import jax
import jax.numpy as jnp
from jax import lax
from jax.experimental import pallas as pl
from jax.experimental.pallas import tpu as pltpu

_INV_SQRT2 = 0.7071067811865476
_MIB = 1024 * 1024

# Older jax releases call this TPUCompilerParams.
_CompilerParams = getattr(pltpu, "CompilerParams", None) or getattr(
    pltpu, "TPUCompilerParams", None)


def _round_up(x, m):
    return ((x + m - 1) // m) * m


def _largest_divisor_tile(padded, target):
    """Largest multiple of 128 that divides `padded` and is <= target (>= 128)."""
    cand = max(128, min(target, padded))
    cand -= cand % 128
    while cand > 128 and padded % cand != 0:
        cand -= 128
    return cand


def _tpu_config():
    """Per-generation tiling / VMEM defaults (safe fallback if detection fails)."""
    kind = ""
    try:
        kind = jax.devices()[0].device_kind.lower()
    except Exception:
        pass
    vmem_phys = None
    try:
        vmem_phys = int(pltpu.get_tpu_info().vmem_capacity_bytes)
    except Exception:
        vmem_phys = None

    is_v7 = ("7" in kind) or (vmem_phys is not None and vmem_phys <= 80 * _MIB)
    is_v6 = "v6" in kind
    is_v5e = ("v5" in kind and ("lite" in kind or "5e" in kind)) or "v5e" in kind

    if is_v7:
        # 64 MiB VMEM / 2 TensorCores: leave compiler headroom, smaller F tiles.
        return dict(vmem_cap=48 * _MIB, token_tile=512, tf_target=512,
                    pad_mult=256, two_cores=True)
    if is_v6:
        # 128 MiB VMEM; MXU roofline needs TM >= ~650 vs HBM weight streaming.
        return dict(vmem_cap=100 * _MIB, token_tile=768, tf_target=1024,
                    pad_mult=256, two_cores=False)
    if is_v5e:
        # Already compute-bound at TM=256; 128 is the native MXU tile.
        return dict(vmem_cap=100 * _MIB, token_tile=256, tf_target=1024,
                    pad_mult=128, two_cores=False)
    # Unknown backend: conservative (v7x-safe) sizing.
    return dict(vmem_cap=48 * _MIB, token_tile=256, tf_target=512,
                pad_mult=128, two_cores=True)


def _moe_kernel(tf, use_tanh_gelu,
                active_ref, we_ref, wf_ref,
                x_ref, comb_ref, w1_ref, b1_ref, w2_ref, b2_ref,
                out_ref, acc_ref):
    """Grid step = (token tile, expert, F tile).  Accumulate into f32 VMEM scratch."""
    ti = pl.program_id(0)
    e = pl.program_id(1)
    fi = pl.program_id(2)
    n_e = pl.num_programs(1)
    n_f = pl.num_programs(2)

    @pl.when(jnp.logical_and(e == 0, fi == 0))
    def _():
        acc_ref[...] = jnp.zeros_like(acc_ref)

    active = active_ref[ti * n_e + e]

    @pl.when(active > 0)
    def _():
        x = x_ref[...]                                               # [TM, Dp] bf16
        # Fused fc1: value | gate halves adjacent in lanes for this F tile.
        h = jnp.dot(x, w1_ref[0], preferred_element_type=jnp.float32) + b1_ref[0]
        val = h[:, :tf]
        gate = h[:, tf:]
        if use_tanh_gelu:
            gg = jax.nn.gelu(gate, approximate=True)                 # EUP path (v5e flag)
        else:
            gg = 0.5 * gate * (1.0 + lax.erf(gate * _INV_SQRT2))     # exact, torch default
        act = (val * gg).astype(x.dtype)                             # [TM, tf] bf16

        part = jnp.dot(act, w2_ref[0], preferred_element_type=jnp.float32)  # [TM, Dp]
        # fc2 bias only once per expert (first F tile).
        part = part + b2_ref[0] * (fi == 0).astype(jnp.float32)
        # Per-token routing weight for this expert ([TM, 1]).
        acc_ref[...] += part * comb_ref[0]

    @pl.when(jnp.logical_and(e == n_e - 1, fi == n_f - 1))
    def _():
        out_ref[...] = acc_ref[...]


def moe_forward(x, params, top_k, *, token_tile=None, use_tanh_gelu=False,
                compute_dtype=jnp.bfloat16):
    b, s, d = x.shape
    t = b * s
    x2d = x.reshape(t, d).astype(jnp.float32)
    cfg = _tpu_config()

    # --- gating (plain JAX glue): linear + softmax + top-k + renormalize ---
    # TODO(synk): data-dependent top-k dispatch has no clean dense-BlockSpec equivalent;
    # converted to a dense combine matrix + per-(tile, expert) active mask.
    gate_logits = x2d @ params["gate_w"].T + params["gate_b"]
    gate_probs = jax.nn.softmax(gate_logits, axis=-1)
    topk_probs, topk_idx = lax.top_k(gate_probs, top_k)
    topk_norm = topk_probs / (jnp.sum(topk_probs, axis=-1, keepdims=True) + 1e-6)
    e_num = params["gate_w"].shape[0]
    onehot = jax.nn.one_hot(topk_idx, e_num, dtype=jnp.float32)        # [T, K, E]
    combine = jnp.einsum("tke,tk->te", onehot, topk_norm)              # [T, E]

    w1v, w1g = params["w1v"], params["w1g"]
    b1v, b1g = params["b1v"], params["b1g"]
    w2, b2 = params["w2"], params["b2"]
    f = w1v.shape[2]

    # --- tiling / padding (generation-aware) ---
    mult_d = cfg["pad_mult"] if d >= 512 else 128
    mult_f = cfg["pad_mult"] if f >= 512 else 128
    d_pad = _round_up(d, mult_d)
    f_pad = _round_up(f, mult_f)

    tm = cfg["token_tile"] if token_tile is None else token_tile
    tm = min(tm, _round_up(t, 16))            # bf16 tiles want >= 16 sublanes
    if cfg["two_cores"]:
        while tm > 128 and -(-t // tm) < 2:   # keep both v7x TensorCores busy
            tm //= 2
    tf = _largest_divisor_tile(f_pad, cfg["tf_target"])

    def ws_bytes(tm_, tf_):
        wb = jnp.dtype(compute_dtype).itemsize
        return int(2 * tm_ * d_pad * wb             # x tile (double-buffered)
                   + 2 * d_pad * (2 * tf_) * wb     # fused w1 block x2
                   + 2 * tf_ * d_pad * wb           # w2 block x2
                   + 2 * 8 * (2 * tf_ + d_pad) * 4  # biases (sublane-padded) x2
                   + 2 * tm_ * 128 * 4              # combine column (lane-padded) x2
                   + 2 * tm_ * d_pad * 4            # out block (f32) x2
                   + tm_ * d_pad * 4                # f32 accumulator scratch
                   + 6 * tm_ * tf_ * 4)             # live f32 temporaries

    # Shrink F tile, then the token tile, until the working set fits this chip's VMEM.
    while ws_bytes(tm, tf) > cfg["vmem_cap"] and (tf > 128 or tm > 64):
        if tf > 128:
            tf = _largest_divisor_tile(f_pad, tf - 128)
        else:
            tm = max(64, tm // 2)

    t_pad = _round_up(t, tm)
    t_tiles = t_pad // tm
    f_tiles = f_pad // tf
    vmem_limit = int(min(cfg["vmem_cap"], max(2 * ws_bytes(tm, tf), 32 * _MIB)))

    # --- operand layout ---
    x_p = jnp.pad(x2d, ((0, t_pad - t), (0, d_pad - d))).astype(compute_dtype)
    comb_pad = jnp.pad(combine, ((0, t_pad - t), (0, 0)))              # [T_pad, E]
    comb_p = jnp.transpose(comb_pad, (1, 0))[:, :, None]               # [E, T_pad, 1]

    def pad_w(a, r, c):
        return jnp.pad(a, ((0, 0), (0, r - a.shape[1]), (0, c - a.shape[2])))

    w1v_p = pad_w(w1v, d_pad, f_pad).astype(compute_dtype)
    w1g_p = pad_w(w1g, d_pad, f_pad).astype(compute_dtype)
    # Fused fc1 weight: per F tile, value half and gate half adjacent in lanes.
    w1_p = jnp.concatenate(
        [w1v_p.reshape(e_num, d_pad, f_tiles, tf),
         w1g_p.reshape(e_num, d_pad, f_tiles, tf)], axis=-1,
    ).reshape(e_num, d_pad, 2 * f_pad)

    b1v_p = jnp.pad(b1v, ((0, 0), (0, f_pad - f)))
    b1g_p = jnp.pad(b1g, ((0, 0), (0, f_pad - f)))
    b1_p = jnp.concatenate(
        [b1v_p.reshape(e_num, f_tiles, tf),
         b1g_p.reshape(e_num, f_tiles, tf)], axis=-1,
    ).reshape(e_num, 1, 2 * f_pad)

    w2_p = pad_w(w2, f_pad, d_pad).astype(compute_dtype)               # [E, Fp, Dp]
    b2_p = jnp.pad(b2, ((0, 0), (0, d_pad - d)))[:, None, :]           # [E, 1, Dp] f32

    # --- scalar-prefetch routing tables (SMEM) ---
    active_te = jnp.any(comb_pad.reshape(t_tiles, tm, e_num) > 0.0, axis=1)  # [Tt, E]
    act_flat = active_te.reshape(-1)                                         # [Tt*E]

    # Carried-forward expert index: inactive (tile, expert) steps re-request the
    # previously fetched weight block so no DMA is issued for skipped experts.
    e_ids = jnp.tile(jnp.arange(e_num, dtype=jnp.int32), t_tiles)

    def _carry(c, ae):
        a, ee = ae
        nc = jnp.where(a, ee, c)
        return nc, nc

    _, w_eidx = lax.scan(_carry, jnp.int32(0), (act_flat, e_ids))            # [Tt*E]
    fi_ids = jnp.tile(jnp.arange(f_tiles, dtype=jnp.int32), t_tiles * e_num)
    w_fidx = jnp.where(jnp.repeat(act_flat, f_tiles), fi_ids,
                       jnp.int32(f_tiles - 1))                               # [Tt*E*Ft]
    active_i32 = act_flat.astype(jnp.int32)

    # --- index maps (receive grid indices + the 3 scalar-prefetch refs) ---
    def _x_map(ti, e, fi, act, we, wf):
        return (ti, 0)

    def _comb_map(ti, e, fi, act, we, wf):
        return (e, ti, 0)

    def _w1_map(ti, e, fi, act, we, wf):
        k = ti * e_num + e
        return (we[k], 0, wf[k * f_tiles + fi])

    def _b1_map(ti, e, fi, act, we, wf):
        k = ti * e_num + e
        return (we[k], 0, wf[k * f_tiles + fi])

    def _w2_map(ti, e, fi, act, we, wf):
        k = ti * e_num + e
        return (we[k], wf[k * f_tiles + fi], 0)

    def _b2_map(ti, e, fi, act, we, wf):
        k = ti * e_num + e
        return (we[k], 0, 0)

    def _out_map(ti, e, fi, act, we, wf):
        return (ti, 0)

    kernel = functools.partial(_moe_kernel, tf, use_tanh_gelu)

    out_p = pl.pallas_call(
        kernel,
        out_shape=jax.ShapeDtypeStruct((t_pad, d_pad), jnp.float32),
        grid_spec=pltpu.PrefetchScalarGridSpec(
            num_scalar_prefetch=3,
            grid=(t_tiles, e_num, f_tiles),
            in_specs=[
                pl.BlockSpec((tm, d_pad), _x_map),          # x tile (resident over E, F)
                pl.BlockSpec((1, tm, 1), _comb_map),        # routing weights column
                pl.BlockSpec((1, d_pad, 2 * tf), _w1_map),  # fused fc1 weight (F tile)
                pl.BlockSpec((1, 1, 2 * tf), _b1_map),      # fused fc1 bias (F tile)
                pl.BlockSpec((1, tf, d_pad), _w2_map),      # fc2 weight (F tile)
                pl.BlockSpec((1, 1, d_pad), _b2_map),       # fc2 bias
            ],
            out_specs=pl.BlockSpec((tm, d_pad), _out_map),
            scratch_shapes=[pltpu.VMEM((tm, d_pad), jnp.float32)],
        ),
        compiler_params=_CompilerParams(
            dimension_semantics=("parallel", "arbitrary", "arbitrary"),
            vmem_limit_bytes=vmem_limit,
        ),
    )(active_i32, w_eidx, w_fidx, x_p, comb_p, w1_p, b1_p, w2_p, b2_p)

    return out_p[:t, :d].reshape(b, s, d)


def init_params(key, dim, ff_dim, num_experts):
    """Deterministic init mirroring nn.Linear defaults (PyTorch layout, transposed/split)."""
    keys = jax.random.split(key, 6)

    def unif(k, shape, fan_in):
        bound = 1.0 / math.sqrt(fan_in)
        return jax.random.uniform(k, shape, jnp.float32, -bound, bound)

    fc1_w = unif(keys[0], (num_experts, 2 * ff_dim, dim), dim)      # [E, 2F, D]
    fc1_b = unif(keys[1], (num_experts, 2 * ff_dim), dim)           # [E, 2F]
    fc2_w = unif(keys[2], (num_experts, dim, ff_dim), ff_dim)       # [E, D, F]
    fc2_b = unif(keys[3], (num_experts, dim), ff_dim)               # [E, D]
    gate_w = unif(keys[4], (num_experts, dim), dim)                 # [E, D]
    gate_b = unif(keys[5], (num_experts,), dim)                     # [E]

    w1 = jnp.transpose(fc1_w, (0, 2, 1))                            # [E, D, 2F]
    return {
        "w1v": w1[:, :, :ff_dim],                                   # [E, D, F] value half
        "w1g": w1[:, :, ff_dim:],                                   # [E, D, F] gate half
        "b1v": fc1_b[:, :ff_dim],
        "b1g": fc1_b[:, ff_dim:],
        "w2": jnp.transpose(fc2_w, (0, 2, 1)),                      # [E, F, D]
        "b2": fc2_b,
        "gate_w": gate_w,
        "gate_b": gate_b,
    }


def moe_reference(x, params, top_k):
    """Pure-JAX f32 reference reproducing the PyTorch forward semantics."""
    b, s, d = x.shape
    t = b * s
    x2d = x.reshape(t, d).astype(jnp.float32)
    gate_logits = x2d @ params["gate_w"].T + params["gate_b"]
    gate_probs = jax.nn.softmax(gate_logits, axis=-1)
    topk_probs, topk_idx = lax.top_k(gate_probs, top_k)
    topk_norm = topk_probs / (jnp.sum(topk_probs, axis=-1, keepdims=True) + 1e-6)
    num_experts = params["gate_w"].shape[0]
    out = jnp.zeros_like(x2d)
    for i in range(num_experts):
        w_i = jnp.sum(jnp.where(topk_idx == i, topk_norm, 0.0), axis=-1, keepdims=True)
        val = x2d @ params["w1v"][i] + params["b1v"][i]
        gate = x2d @ params["w1g"][i] + params["b1g"][i]
        a = val * jax.nn.gelu(gate, approximate=False)
        eo = a @ params["w2"][i] + params["b2"][i]
        out = out + eo * w_i
    return out.reshape(b, s, d)


if __name__ == "__main__":
    dim, ff_dim, num_experts, top_k = 32, 64, 4, 2
    batch, seq = 2, 8

    key = jax.random.PRNGKey(0)
    k_param, k_x = jax.random.split(key)
    params = init_params(k_param, dim, ff_dim, num_experts)
    x = jax.random.normal(k_x, (batch, seq, dim), dtype=jnp.float32)

    out = moe_forward(x, params, top_k)
    out = jax.block_until_ready(out)

    ref = moe_reference(x, params, top_k)
    assert out.shape == (batch, seq, dim)
    assert bool(jnp.all(jnp.isfinite(out)))
    # bf16 MXU inputs vs f32 reference -> loosened tolerance.
    assert bool(jnp.allclose(out, ref, rtol=5e-2, atol=5e-2))

    print("KERNEL_OK")
</pallas_src>

<mosaic_0001>
module attributes {stable_mosaic.version = 11 : i64} {
  func.func @_moe_kernel(%arg0: i32, %arg1: i32, %arg2: i32, %arg3: memref<4xi32, #tpu.memory_space<smem>>, %arg4: memref<4xi32, #tpu.memory_space<smem>>, %arg5: memref<4xi32, #tpu.memory_space<smem>>, %arg6: memref<16x128xbf16, #tpu.memory_space<vmem>>, %arg7: memref<1x16x1xf32, #tpu.memory_space<vmem>>, %arg8: memref<1x128x256xbf16, #tpu.memory_space<vmem>>, %arg9: memref<1x1x256xf32, #tpu.memory_space<vmem>>, %arg10: memref<1x128x128xbf16, #tpu.memory_space<vmem>>, %arg11: memref<1x1x128xf32, #tpu.memory_space<vmem>>, %arg12: memref<16x128xf32, #tpu.memory_space<vmem>>, %arg13: memref<16x128xf32, #tpu.memory_space<vmem>>) attributes {dimension_semantics = [#tpu.dimension_semantics<parallel>, #tpu.dimension_semantics<arbitrary>, #tpu.dimension_semantics<arbitrary>], iteration_bounds = array<i64: 1, 4, 1>, scalar_prefetch = 3 : i64, scratch_operands = 1 : i64, tpu.core_type = #tpu.core_type<tc>, window_params = [{transform_indices = @transform_0, window_bounds = array<i64: 16, 128>}, {transform_indices = @transform_1, window_bounds = array<i64: 1, 16, 1>}, {transform_indices = @transform_2, window_bounds = array<i64: 1, 128, 256>}, {transform_indices = @transform_3, window_bounds = array<i64: 1, 1, 256>}, {transform_indices = @transform_4, window_bounds = array<i64: 1, 128, 128>}, {transform_indices = @transform_5, window_bounds = array<i64: 1, 1, 128>}, {transform_indices = @transform_6, window_bounds = array<i64: 16, 128>}]} {
    %c0_i32 = arith.constant 0 : i32
    %0 = arith.cmpi eq, %arg1, %c0_i32 : i32
    %c0_i32_0 = arith.constant 0 : i32
    %1 = arith.cmpi eq, %arg2, %c0_i32_0 : i32
    %2 = arith.andi %0, %1 : i1
    %3 = arith.extui %2 : i1 to i32
    %c0_i32_1 = arith.constant 0 : i32
    %4 = arith.cmpi ne, %3, %c0_i32_1 : i32
    scf.if %4 {
      %cst = arith.constant 0.000000e+00 : f32
      %17 = vector.broadcast %cst : f32 to vector<16x128xf32>
      %c0 = arith.constant 0 : index
      %c0_6 = arith.constant 0 : index
      %18 = vector.load %arg13[%c0, %c0_6] : memref<16x128xf32, #tpu.memory_space<vmem>>, vector<16x128xf32>
      tpu.vector_store %arg13[%c0, %c0_6], %17 {strides = array<i32>} : memref<16x128xf32, #tpu.memory_space<vmem>>, vector<16x128xf32>,
    } else {
    }
    %c4_i32 = arith.constant 4 : i32
    %5 = arith.muli %arg0, %c4_i32 : i32
    %6 = arith.addi %5, %arg1 : i32
    %7 = arith.index_cast %6 : i32 to index
    %8 = memref.load %arg3[%7] : memref<4xi32, #tpu.memory_space<smem>>
    %c0_i32_2 = arith.constant 0 : i32
    %9 = arith.cmpi sgt, %8, %c0_i32_2 : i32
    %10 = arith.extui %9 : i1 to i32
    %c0_i32_3 = arith.constant 0 : i32
    %11 = arith.cmpi ne, %10, %c0_i32_3 : i32
    scf.if %11 {
      %c0 = arith.constant 0 : index
      %c0_6 = arith.constant 0 : index
      %17 = vector.load %arg6[%c0, %c0_6] : memref<16x128xbf16, #tpu.memory_space<vmem>>, vector<16x128xbf16>
      %c0_7 = arith.constant 0 : index
      %c0_8 = arith.constant 0 : index
      %c0_9 = arith.constant 0 : index
      %18 = vector.load %arg8[%c0_7, %c0_8, %c0_9] : memref<1x128x256xbf16, #tpu.memory_space<vmem>>, vector<1x128x256xbf16>
      %19 = vector.shape_cast %18 : vector<1x128x256xbf16> to vector<128x256xbf16>
      %cst = arith.constant dense<0.000000e+00> : vector<16x256xf32>
      %20 = tpu.matmul %17, %19, %cst {dimension_numbers = #tpu.dot_dimension_numbers<[1], [0], [0], [1], [0, 0, 1, 1], [], []>} : vector<16x128xbf16>, vector<128x256xbf16>, vector<16x256xf32> -> vector<16x256xf32>
      %c0_10 = arith.constant 0 : index
      %c0_11 = arith.constant 0 : index
      %c0_12 = arith.constant 0 : index
      %21 = vector.load %arg9[%c0_10, %c0_11, %c0_12] : memref<1x1x256xf32, #tpu.memory_space<vmem>>, vector<1x1x256xf32>
      %22 = vector.shape_cast %21 : vector<1x1x256xf32> to vector<1x256xf32>
      %23 = vector.broadcast %22 : vector<1x256xf32> to vector<16x256xf32>
      %24 = arith.addf %20, %23 : vector<16x256xf32>
      %25 = vector.extract_strided_slice %24 {offsets = [0, 0], sizes = [16, 128], strides = [1, 1]} : vector<16x256xf32> to vector<16x128xf32>
      %26 = vector.extract_strided_slice %24 {offsets = [0, 128], sizes = [16, 128], strides = [1, 1]} : vector<16x256xf32> to vector<16x128xf32>
      %cst_13 = arith.constant 5.000000e-01 : f32
      %27 = vector.broadcast %cst_13 : f32 to vector<16x128xf32>
      %28 = arith.mulf %27, %26 : vector<16x128xf32>
      %cst_14 = arith.constant 0.707106769 : f32
      %29 = vector.broadcast %cst_14 : f32 to vector<16x128xf32>
      %30 = arith.mulf %26, %29 : vector<16x128xf32>
      %31 = math.erf %30 : vector<16x128xf32>
      %cst_15 = arith.constant 1.000000e+00 : f32
      %32 = vector.broadcast %cst_15 : f32 to vector<16x128xf32>
      %33 = arith.addf %32, %31 : vector<16x128xf32>
      %34 = arith.mulf %28, %33 : vector<16x128xf32>
      %35 = arith.mulf %25, %34 : vector<16x128xf32>
      %36 = arith.truncf %35 : vector<16x128xf32> to vector<16x128xbf16>
      %c0_16 = arith.constant 0 : index
      %c0_17 = arith.constant 0 : index
      %c0_18 = arith.constant 0 : index
      %37 = vector.load %arg10[%c0_16, %c0_17, %c0_18] : memref<1x128x128xbf16, #tpu.memory_space<vmem>>, vector<1x128x128xbf16>
      %38 = vector.shape_cast %37 : vector<1x128x128xbf16> to vector<128x128xbf16>
      %cst_19 = arith.constant dense<0.000000e+00> : vector<16x128xf32>
      %39 = tpu.matmul %36, %38, %cst_19 {dimension_numbers = #tpu.dot_dimension_numbers<[1], [0], [0], [1], [0, 0, 1, 1], [], []>} : vector<16x128xbf16>, vector<128x128xbf16>, vector<16x128xf32> -> vector<16x128xf32>
      %c0_20 = arith.constant 0 : index
      %c0_21 = arith.constant 0 : index
      %c0_22 = arith.constant 0 : index
      %40 = vector.load %arg11[%c0_20, %c0_21, %c0_22] : memref<1x1x128xf32, #tpu.memory_space<vmem>>, vector<1x1x128xf32>
      %41 = vector.shape_cast %40 : vector<1x1x128xf32> to vector<1x128xf32>
      %c0_i32_23 = arith.constant 0 : i32
      %42 = arith.cmpi eq, %arg2, %c0_i32_23 : i32
      %43 = arith.extui %42 : i1 to i32
      %44 = arith.sitofp %43 : i32 to f32
      %45 = vector.broadcast %44 : f32 to vector<1x128xf32>
      %46 = arith.mulf %41, %45 : vector<1x128xf32>
      %47 = vector.broadcast %46 : vector<1x128xf32> to vector<16x128xf32>
      %48 = arith.addf %39, %47 : vector<16x128xf32>
      %c0_24 = arith.constant 0 : index
      %c0_25 = arith.constant 0 : index
      %49 = vector.load %arg13[%c0_24, %c0_25] : memref<16x128xf32, #tpu.memory_space<vmem>>, vector<16x128xf32>
      %c0_26 = arith.constant 0 : index
      %c0_27 = arith.constant 0 : index
      %c0_28 = arith.constant 0 : index
      %50 = vector.load %arg7[%c0_26, %c0_27, %c0_28] : memref<1x16x1xf32, #tpu.memory_space<vmem>>, vector<1x16x1xf32>
      %51 = vector.shape_cast %50 : vector<1x16x1xf32> to vector<16x1xf32>
      %52 = vector.broadcast %51 : vector<16x1xf32> to vector<16x128xf32>
      %53 = arith.mulf %48, %52 : vector<16x128xf32>
      %54 = arith.addf %49, %53 : vector<16x128xf32>
      %c0_29 = arith.constant 0 : index
      %c0_30 = arith.constant 0 : index
      %55 = vector.load %arg13[%c0_29, %c0_30] : memref<16x128xf32, #tpu.memory_space<vmem>>, vector<16x128xf32>
      tpu.vector_store %arg13[%c0_29, %c0_30], %54 {strides = array<i32>} : memref<16x128xf32, #tpu.memory_space<vmem>>, vector<16x128xf32>,
    } else {
    }
    %c3_i32 = arith.constant 3 : i32
    %12 = arith.cmpi eq, %arg1, %c3_i32 : i32
    %c0_i32_4 = arith.constant 0 : i32
    %13 = arith.cmpi eq, %arg2, %c0_i32_4 : i32
    %14 = arith.andi %12, %13 : i1
    %15 = arith.extui %14 : i1 to i32
    %c0_i32_5 = arith.constant 0 : i32
    %16 = arith.cmpi ne, %15, %c0_i32_5 : i32
    scf.if %16 {
      %c0 = arith.constant 0 : index
      %c0_6 = arith.constant 0 : index
      %17 = vector.load %arg13[%c0, %c0_6] : memref<16x128xf32, #tpu.memory_space<vmem>>, vector<16x128xf32>
      %c0_7 = arith.constant 0 : index
      %c0_8 = arith.constant 0 : index
      %18 = vector.load %arg12[%c0_7, %c0_8] : memref<16x128xf32, #tpu.memory_space<vmem>>, vector<16x128xf32>
      tpu.vector_store %arg12[%c0_7, %c0_8], %17 {strides = array<i32>} : memref<16x128xf32, #tpu.memory_space<vmem>>, vector<16x128xf32>,
    } else {
    }
    return
  }
  func.func @transform_0(%arg0: i32, %arg1: i32, %arg2: i32, %arg3: memref<4xi32, #tpu.memory_space<smem>>, %arg4: memref<4xi32, #tpu.memory_space<smem>>, %arg5: memref<4xi32, #tpu.memory_space<smem>>) -> (i32, i32) {
    %c0_i32 = arith.constant 0 : i32
    %c0_i32_0 = arith.constant 0 : i32
    return %arg0, %c0_i32 : i32, i32
  }
  func.func @transform_1(%arg0: i32, %arg1: i32, %arg2: i32, %arg3: memref<4xi32, #tpu.memory_space<smem>>, %arg4: memref<4xi32, #tpu.memory_space<smem>>, %arg5: memref<4xi32, #tpu.memory_space<smem>>) -> (i32, i32, i32) {
    %c0_i32 = arith.constant 0 : i32
    %c0_i32_0 = arith.constant 0 : i32
    return %arg1, %arg0, %c0_i32 : i32, i32, i32
  }
  func.func @transform_2(%arg0: i32, %arg1: i32, %arg2: i32, %arg3: memref<4xi32, #tpu.memory_space<smem>>, %arg4: memref<4xi32, #tpu.memory_space<smem>>, %arg5: memref<4xi32, #tpu.memory_space<smem>>) -> (i32, i32, i32) {
    %c4_i32 = arith.constant 4 : i32
    %0 = arith.muli %arg0, %c4_i32 : i32
    %1 = arith.addi %0, %arg1 : i32
    %2 = arith.index_cast %1 : i32 to index
    %3 = memref.load %arg4[%2] : memref<4xi32, #tpu.memory_space<smem>>
    %c1_i32 = arith.constant 1 : i32
    %4 = arith.muli %1, %c1_i32 : i32
    %5 = arith.addi %4, %arg2 : i32
    %6 = arith.index_cast %5 : i32 to index
    %7 = memref.load %arg5[%6] : memref<4xi32, #tpu.memory_space<smem>>
    %c0_i32 = arith.constant 0 : i32
    %c0_i32_0 = arith.constant 0 : i32
    return %3, %c0_i32, %7 : i32, i32, i32
  }
  func.func @transform_3(%arg0: i32, %arg1: i32, %arg2: i32, %arg3: memref<4xi32, #tpu.memory_space<smem>>, %arg4: memref<4xi32, #tpu.memory_space<smem>>, %arg5: memref<4xi32, #tpu.memory_space<smem>>) -> (i32, i32, i32) {
    %c4_i32 = arith.constant 4 : i32
    %0 = arith.muli %arg0, %c4_i32 : i32
    %1 = arith.addi %0, %arg1 : i32
    %2 = arith.index_cast %1 : i32 to index
    %3 = memref.load %arg4[%2] : memref<4xi32, #tpu.memory_space<smem>>
    %c1_i32 = arith.constant 1 : i32
    %4 = arith.muli %1, %c1_i32 : i32
    %5 = arith.addi %4, %arg2 : i32
    %6 = arith.index_cast %5 : i32 to index
    %7 = memref.load %arg5[%6] : memref<4xi32, #tpu.memory_space<smem>>
    %c0_i32 = arith.constant 0 : i32
    %c0_i32_0 = arith.constant 0 : i32
    return %3, %c0_i32, %7 : i32, i32, i32
  }
  func.func @transform_4(%arg0: i32, %arg1: i32, %arg2: i32, %arg3: memref<4xi32, #tpu.memory_space<smem>>, %arg4: memref<4xi32, #tpu.memory_space<smem>>, %arg5: memref<4xi32, #tpu.memory_space<smem>>) -> (i32, i32, i32) {
    %c4_i32 = arith.constant 4 : i32
    %0 = arith.muli %arg0, %c4_i32 : i32
    %1 = arith.addi %0, %arg1 : i32
    %2 = arith.index_cast %1 : i32 to index
    %3 = memref.load %arg4[%2] : memref<4xi32, #tpu.memory_space<smem>>
    %c1_i32 = arith.constant 1 : i32
    %4 = arith.muli %1, %c1_i32 : i32
    %5 = arith.addi %4, %arg2 : i32
    %6 = arith.index_cast %5 : i32 to index
    %7 = memref.load %arg5[%6] : memref<4xi32, #tpu.memory_space<smem>>
    %c0_i32 = arith.constant 0 : i32
    %c0_i32_0 = arith.constant 0 : i32
    return %3, %7, %c0_i32 : i32, i32, i32
  }
  func.func @transform_5(%arg0: i32, %arg1: i32, %arg2: i32, %arg3: memref<4xi32, #tpu.memory_space<smem>>, %arg4: memref<4xi32, #tpu.memory_space<smem>>, %arg5: memref<4xi32, #tpu.memory_space<smem>>) -> (i32, i32, i32) {
    %c4_i32 = arith.constant 4 : i32
    %0 = arith.muli %arg0, %c4_i32 : i32
    %1 = arith.addi %0, %arg1 : i32
    %2 = arith.index_cast %1 : i32 to index
    %3 = memref.load %arg4[%2] : memref<4xi32, #tpu.memory_space<smem>>
    %c0_i32 = arith.constant 0 : i32
    %c0_i32_0 = arith.constant 0 : i32
    %c0_i32_1 = arith.constant 0 : i32
    return %3, %c0_i32, %c0_i32_0 : i32, i32, i32
  }
  func.func @transform_6(%arg0: i32, %arg1: i32, %arg2: i32, %arg3: memref<4xi32, #tpu.memory_space<smem>>, %arg4: memref<4xi32, #tpu.memory_space<smem>>, %arg5: memref<4xi32, #tpu.memory_space<smem>>) -> (i32, i32) {
    %c0_i32 = arith.constant 0 : i32
    %c0_i32_0 = arith.constant 0 : i32
    return %arg0, %c0_i32 : i32, i32
  }
}

</mosaic_0001>

<llo_original>
// kernel: tpu_custom_call.1
$region0: #{tpu_custom_call.1}
  #allocation0 [shape = 'u32[]', space=smem, size = 0x4, offset = 0x4, fixed_abs, tag = 'smem constant byte address 0x4 - core index']
  #allocation1 [shape = 'u32[144,128]{1,0:T(1,128)}', space=vmem, size = 0x12000, scoped, tag = 'internal scratch']
  #allocation2 [shape = 'f32[16,128]{1,0:T(8,128)}', space=vmem, size = 0x2000, scoped, tag = 'scratch operand']
  #allocation3 [shape = 's32[1]{0}', space=sflag, size = 0x4, scoped, tag = 'scoped memory for tpu_custom_call.1']
  #allocation4 [shape = 'u8[512]{0}', space=smem, size = 0x200, scoped, tag = 'prefetched SMEM operand 0']
  #allocation5 [shape = 'u8[512]{0}', space=smem, size = 0x200, scoped, tag = 'prefetched SMEM operand 1']
  #allocation6 [shape = 'u8[512]{0}', space=smem, size = 0x200, scoped, tag = 'prefetched SMEM operand 2']
  %s0 = inlined_call_operand.vmem [shape: s32[4], index: 0, kind: input, shape index: {}]
  %s1 = inlined_call_operand.vmem [shape: s32[4], index: 1, kind: input, shape index: {}]
  %s2 = inlined_call_operand.vmem [shape: s32[4], index: 2, kind: input, shape index: {}]
  %s3 = inlined_call_operand.vmem [shape: bf16[16,128], index: 3, kind: input, shape index: {}]
  %s4 = inlined_call_operand.vmem [shape: f32[4,16,1], index: 4, kind: input, shape index: {}]
  %s5 = inlined_call_operand.hbm [shape: bf16[4,128,256], index: 5, kind: input, shape index: {}]
  %s6 = inlined_call_operand.vmem [shape: f32[4,1,256], index: 6, kind: input, shape index: {}]
  %s7 = inlined_call_operand.hbm [shape: bf16[4,128,128], index: 7, kind: input, shape index: {}]
  %s8 = inlined_call_operand.vmem [shape: f32[4,1,128], index: 8, kind: input, shape index: {}]
  %s9 = inlined_call_operand.hbm [shape: f32[16,128], index: 9, kind: output, shape index: {}]
  %s10 = sld [smem:[#allocation0]]
  $region77: #{tpu_custom_call.1} parent=0
    _
  %s12 = ssub.s32 1, %s10
  %s13 = scalar_select 0, %s12, %s10
  %s14 = sshll.u32 %s0, 4
  %s15 = int_to_ptr.vmem [resolvable:$true] %s14
  %17 = dma.vmem_to_smem %s15, 16, [#allocation4], [#allocation3]
  %s18 = sshll.u32 %s1, 4
  %s19 = int_to_ptr.vmem [resolvable:$true] %s18
  %21 = dma.vmem_to_smem %s19, 16, [#allocation5], [#allocation3]
  %s22 = sshll.u32 %s2, 4
  %s23 = int_to_ptr.vmem [resolvable:$true] %s22
  %25 = dma.vmem_to_smem %s23, 16, [#allocation6], [#allocation3]
  %26 = dma.done [#allocation3], 48
  %27 = sfence
  $region1: #{tpu_custom_call.1} parent=0
    #allocation7 [shape = 'u8[131072]{0}', space=vmem, size = 0x20000, scoped, tag = 'input window, operand 5']
    #allocation8 [shape = 's32[2]{0}', space=sflag, size = 0x8, scoped, tag = 'scoped memory for tpu_custom_call.1']
    #allocation9 [shape = 's32[2]{0}', space=sflag, size = 0x8, scoped, tag = 'scoped memory for tpu_custom_call.1']
    #allocation10 [shape = 'u8[65536]{0}', space=vmem, size = 0x10000, scoped, tag = 'input window, operand 7']
    #allocation11 [shape = 's32[2]{0}', space=sflag, size = 0x8, scoped, tag = 'scoped memory for tpu_custom_call.1']
    #allocation12 [shape = 'u8[8192]{0}', space=vmem, size = 0x2000, scoped, tag = 'output window, operand 0, single buffered']
    %28 = vsyncpa [#allocation8], 0
    %s29 = scalar_lea.sflag [#allocation8], 1
    %30 = vsyncpa %s29, 0
    %31 = vsyncpa [#allocation11], 0
    %s32 = scalar_lea.sflag [#allocation11], 1
    %33 = vsyncpa %s32, 0
    %34 = vsyncpa [#allocation9], 0
    loop: start=0, step=1, limit=6
    $region2: #{tpu_custom_call.1} parent=1 // loop_pre_header
      _
    $region3: #{tpu_custom_call.1} parent=1 // loop_header
      %s36 = sphi 0, %s40
      %p37 = scmp.ge.s32.totalorder %s36, 6
      %s43 = sphi 0, %s62
      %s44 = sphi 0, %s58
      %s45 = sphi 0, %s54
      %s46 = sphi 0, %s43
      %s47 = sphi 0, %s44
      %s48 = sphi 0, %s45
      %s49 = sphi 0, %s46
      %s50 = sphi 0, %s47
      %s51 = sphi 0, %s48
      %s65 = sphi 0, %s67
      %s68 = sphi 0, %s65
      %s69 = sphi 0, %s68
      %s85 = sphi 0, %s69
      %s93 = sphi 0, %s95
      %s96 = sphi 0, %s93
      %s97 = sphi 0, %s96
      %s113 = sphi 0, %s97
      %s131 = sphi 0, %s133
      %s134 = sphi 0, %s131
      %s135 = sphi 0, %s134
      %s151 = sphi 0, %s135
      %s169 = sphi 0, %s171
      %s172 = sphi 0, %s169
      %s173 = sphi 0, %s172
      %s189 = sphi 0, %s173
      %s207 = sphi 0, %s209
      %s210 = sphi 0, %s207
      %s211 = sphi 0, %s210
      %s227 = sphi 0, %s211
      %s239 = sphi 0, %s241
      %s242 = sphi 0, %s239
      %s243 = sphi 0, %s242
      %s259 = sphi 0, %s243
      %s265 = sphi 0, %s267
      %s268 = sphi 0, %s265
      %s269 = sphi 0, %s268
      %s285 = sphi 0, %s269
    $region4: #{tpu_custom_call.1} parent=1 // loop_header_branch
      %39 = sbr.rel (%p37) target = $region8
    $region5: #{tpu_custom_call.1} parent=1 // loop_body
      %s41 = ssub.s32 %s36, 1
      %s42 = ssub.s32 %s36, 2
      %s52 = sadd.s32 1, %s45
      %p53 = scmp.ge.s32.totalorder %s52, 1
      %s54 = scalar_select %p53, 0, %s52
      %s55 = sadd.s32 1, %s44
      %s56 = scalar_select %p53, %s55, %s44
      %p57 = scmp.ge.s32.totalorder %s56, 4
      %s58 = scalar_select %p57, 0, %s56
      %s59 = sadd.s32 1, %s43
      %s60 = scalar_select %p57, %s59, %s43
      %p61 = scmp.ge.s32.totalorder %s60, 1
      %s62 = scalar_select %p61, 0, %s60
      %s63 = ssub.s32 %s43, %s62
      %p64 = scmp.eq.s32.totalorder %s63, 0
      %s66 = sadd.s32 %s65, 1
      %s67 = scalar_select %p64, %s65, %s66
      %p70 = pneg %p64
      %p71 = scmp.eq.s32.totalorder %s36, 3
      %p72 = por %p70, %p71
      %p73 = scmp.ne.s32.totalorder %s65, %s68
      %p74 = scmp.eq.s32.totalorder %s36, 0
      %p75 = por %p73, %p74
      %p76 = scmp.ne.s32.totalorder %s65, %s68
      %p77 = scmp.eq.s32.totalorder %s41, 3
      %p78 = por %p76, %p77
      %p79 = scmp.ne.s32.totalorder %s68, %s69
      %p80 = scmp.eq.s32.totalorder %s41, 0
      %p81 = por %p79, %p80
      %p82 = scmp.ne.s32.totalorder %s68, %s69
      %p83 = scmp.eq.s32.totalorder %s42, 3
      %p84 = por %p82, %p83
      %p86 = scmp.ne.s32.totalorder %s69, %s85
      %p87 = scmp.eq.s32.totalorder %s42, 0
      %p88 = por %p86, %p87
      %s89 = ssub.s32 %s44, %s58
      %s90 = ssub.s32 %s43, %s62
      %s91 = sor.u32 %s89, %s90
      %p92 = scmp.eq.s32.totalorder %s91, 0
      %s94 = sadd.s32 %s93, 1
      %s95 = scalar_select %p92, %s93, %s94
      %p98 = pneg %p92
      %p99 = scmp.eq.s32.totalorder %s36, 3
      %p100 = por %p98, %p99
      %p101 = scmp.ne.s32.totalorder %s93, %s96
      %p102 = scmp.eq.s32.totalorder %s36, 0
      %p103 = por %p101, %p102
      %p104 = scmp.ne.s32.totalorder %s93, %s96
      %p105 = scmp.eq.s32.totalorder %s41, 3
      %p106 = por %p104, %p105
      %p107 = scmp.ne.s32.totalorder %s96, %s97
      %p108 = scmp.eq.s32.totalorder %s41, 0
      %p109 = por %p107, %p108
      %p110 = scmp.ne.s32.totalorder %s96, %s97
      %p111 = scmp.eq.s32.totalorder %s42, 3
      %p112 = por %p110, %p111
      %p114 = scmp.ne.s32.totalorder %s97, %s113
      %p115 = scmp.eq.s32.totalorder %s42, 0
      %p116 = por %p114, %p115
      %s117 = smul.u32 %s43, 4
      %s118 = sadd.s32 %s117, %s44
      %s119 = sld [smem:[#allocation5 + %s118]]
      %s120 = sadd.s32 %s118, %s45
      %s121 = sld [smem:[#allocation6 + %s120]]
      %s122 = smul.u32 %s62, 4
      %s123 = sadd.s32 %s122, %s58
      %s124 = sld [smem:[#allocation5 + %s123]]
      %s125 = sadd.s32 %s123, %s54
      %s126 = sld [smem:[#allocation6 + %s125]]
      %s127 = ssub.s32 %s119, %s124
      %s128 = ssub.s32 %s121, %s126
      %s129 = sor.u32 %s127, %s128
      %p130 = scmp.eq.s32.totalorder %s129, 0
      %s132 = sadd.s32 %s131, 1
      %s133 = scalar_select %p130, %s131, %s132
      %p136 = pneg %p130
      %p137 = scmp.eq.s32.totalorder %s36, 3
      %p138 = por %p136, %p137
      %p139 = scmp.ne.s32.totalorder %s131, %s134
      %p140 = scmp.eq.s32.totalorder %s36, 0
      %p141 = por %p139, %p140
      %p142 = scmp.ne.s32.totalorder %s131, %s134
      %p143 = scmp.eq.s32.totalorder %s41, 3
      %p144 = por %p142, %p143
      %p145 = scmp.ne.s32.totalorder %s134, %s135
      %p146 = scmp.eq.s32.totalorder %s41, 0
      %p147 = por %p145, %p146
      %p148 = scmp.ne.s32.totalorder %s134, %s135
      %p149 = scmp.eq.s32.totalorder %s42, 3
      %p150 = por %p148, %p149
      %p152 = scmp.ne.s32.totalorder %s135, %s151
      %p153 = scmp.eq.s32.totalorder %s42, 0
      %p154 = por %p152, %p153
      %s155 = smul.u32 %s43, 4
      %s156 = sadd.s32 %s155, %s44
      %s157 = sld [smem:[#allocation5 + %s156]]
      %s158 = sadd.s32 %s156, %s45
      %s159 = sld [smem:[#allocation6 + %s158]]
      %s160 = smul.u32 %s62, 4
      %s161 = sadd.s32 %s160, %s58
      %s162 = sld [smem:[#allocation5 + %s161]]
      %s163 = sadd.s32 %s161, %s54
      %s164 = sld [smem:[#allocation6 + %s163]]
      %s165 = ssub.s32 %s157, %s162
      %s166 = ssub.s32 %s159, %s164
      %s167 = sor.u32 %s165, %s166
      %p168 = scmp.eq.s32.totalorder %s167, 0
      %s170 = sadd.s32 %s169, 1
      %s171 = scalar_select %p168, %s169, %s170
      %p174 = pneg %p168
      %p175 = scmp.eq.s32.totalorder %s36, 3
      %p176 = por %p174, %p175
      %p177 = scmp.ne.s32.totalorder %s169, %s172
      %p178 = scmp.eq.s32.totalorder %s36, 0
      %p179 = por %p177, %p178
      %p180 = scmp.ne.s32.totalorder %s169, %s172
      %p181 = scmp.eq.s32.totalorder %s41, 3
      %p182 = por %p180, %p181
      %p183 = scmp.ne.s32.totalorder %s172, %s173
      %p184 = scmp.eq.s32.totalorder %s41, 0
      %p185 = por %p183, %p184
      %p186 = scmp.ne.s32.totalorder %s172, %s173
      %p187 = scmp.eq.s32.totalorder %s42, 3
      %p188 = por %p186, %p187
      %p190 = scmp.ne.s32.totalorder %s173, %s189
      %p191 = scmp.eq.s32.totalorder %s42, 0
      %p192 = por %p190, %p191
      %s193 = smul.u32 %s43, 4
      %s194 = sadd.s32 %s193, %s44
      %s195 = sld [smem:[#allocation5 + %s194]]
      %s196 = sadd.s32 %s194, %s45
      %s197 = sld [smem:[#allocation6 + %s196]]
      %s198 = smul.u32 %s62, 4
      %s199 = sadd.s32 %s198, %s58
      %s200 = sld [smem:[#allocation5 + %s199]]
      %s201 = sadd.s32 %s199, %s54
      %s202 = sld [smem:[#allocation6 + %s201]]
      %s203 = ssub.s32 %s195, %s200
      %s204 = ssub.s32 %s197, %s202
      %s205 = sor.u32 %s203, %s204
      %p206 = scmp.eq.s32.totalorder %s205, 0
      %s208 = sadd.s32 %s207, 1
      %s209 = scalar_select %p206, %s207, %s208
      %p212 = pneg %p206
      %p213 = scmp.eq.s32.totalorder %s36, 3
      %p214 = por %p212, %p213
      %p215 = scmp.ne.s32.totalorder %s207, %s210
      %p216 = scmp.eq.s32.totalorder %s36, 0
      %p217 = por %p215, %p216
      %p218 = scmp.ne.s32.totalorder %s207, %s210
      %p219 = scmp.eq.s32.totalorder %s41, 3
      %p220 = por %p218, %p219
      %p221 = scmp.ne.s32.totalorder %s210, %s211
      %p222 = scmp.eq.s32.totalorder %s41, 0
      %p223 = por %p221, %p222
      %p224 = scmp.ne.s32.totalorder %s210, %s211
      %p225 = scmp.eq.s32.totalorder %s42, 3
      %p226 = por %p224, %p225
      %p228 = scmp.ne.s32.totalorder %s211, %s227
      %p229 = scmp.eq.s32.totalorder %s42, 0
      %p230 = por %p228, %p229
      %s231 = smul.u32 %s43, 4
      %s232 = sadd.s32 %s231, %s44
      %s233 = sld [smem:[#allocation5 + %s232]]
      %s234 = smul.u32 %s62, 4
      %s235 = sadd.s32 %s234, %s58
      %s236 = sld [smem:[#allocation5 + %s235]]
      %s237 = ssub.s32 %s233, %s236
      %p238 = scmp.eq.s32.totalorder %s237, 0
      %s240 = sadd.s32 %s239, 1
      %s241 = scalar_select %p238, %s239, %s240
      %p244 = pneg %p238
      %p245 = scmp.eq.s32.totalorder %s36, 3
      %p246 = por %p244, %p245
      %p247 = scmp.ne.s32.totalorder %s239, %s242
      %p248 = scmp.eq.s32.totalorder %s36, 0
      %p249 = por %p247, %p248
      %p250 = scmp.ne.s32.totalorder %s239, %s242
      %p251 = scmp.eq.s32.totalorder %s41, 3
      %p252 = por %p250, %p251
      %p253 = scmp.ne.s32.totalorder %s242, %s243
      %p254 = scmp.eq.s32.totalorder %s41, 0
      %p255 = por %p253, %p254
      %p256 = scmp.ne.s32.totalorder %s242, %s243
      %p257 = scmp.eq.s32.totalorder %s42, 3
      %p258 = por %p256, %p257
      %p260 = scmp.ne.s32.totalorder %s243, %s259
      %p261 = scmp.eq.s32.totalorder %s42, 0
      %p262 = por %p260, %p261
      %s263 = ssub.s32 %s43, %s62
      %p264 = scmp.eq.s32.totalorder %s263, 0
      %s266 = sadd.s32 %s265, 1
      %s267 = scalar_select %p264, %s265, %s266
      %p270 = pneg %p264
      %p271 = scmp.eq.s32.totalorder %s36, 3
      %p272 = por %p270, %p271
      %p273 = scmp.ne.s32.totalorder %s265, %s268
      %p274 = scmp.eq.s32.totalorder %s36, 0
      %p275 = por %p273, %p274
      %p276 = scmp.ne.s32.totalorder %s265, %s268
      %p277 = scmp.eq.s32.totalorder %s41, 3
      %p278 = por %p276, %p277
      %p279 = scmp.ne.s32.totalorder %s268, %s269
      %p280 = scmp.eq.s32.totalorder %s41, 0
      %p281 = por %p279, %p280
      %p282 = scmp.ne.s32.totalorder %s268, %s269
      %p283 = scmp.eq.s32.totalorder %s42, 3
      %p284 = por %p282, %p283
      %p286 = scmp.ne.s32.totalorder %s269, %s285
      %p287 = scmp.eq.s32.totalorder %s42, 0
      %p288 = por %p286, %p287
      %p289 = scmp.le.s32.totalorder 1, %s36
      %p290 = scmp.lt.s32.totalorder %s36, 5
      %p291 = pnand %p289, %p290
      %p292 = pneg %p291
      // Predicated region
      $region9: #{tpu_custom_call.1} parent=5 // pred_check
        _
      $region10: #{tpu_custom_call.1} parent=5 // pred_check_branch
        %294 = sbr.rel (%p291) target = $region12
      $region11: #{tpu_custom_call.1} parent=5 // pred_region
        %s295 = ssub.s32 %s36, 1
        // Predicated region
        $region13: #{tpu_custom_call.1} parent=11 // pred_check
          %p296 = pneg %p81
        $region14: #{tpu_custom_call.1} parent=11 // pred_check_branch
          %298 = sbr.rel (%p296) target = $region16
        $region15: #{tpu_custom_call.1} parent=11 // pred_region
          %s299 = smul.u32 2, %s46
          %p300 = scmp.lt.s32.totalorder %s299, 1
          %s301 = scalar_select %p300, %s299, 1
          %s302 = smul.addr %s301, 4
          %s303 = scalar_lea.vmem %s3, %s302
          %s304 = smul.u32 2, %s46
        $region16: #{tpu_custom_call.1} parent=11 // pred_fallthru
          _
      $region12: #{tpu_custom_call.1} parent=5 // pred_fallthru
        _
      %p305 = scmp.lt.s32.totalorder %s36, 4
      // Predicated region
      $region17: #{tpu_custom_call.1} parent=5 // pred_check
        %p306 = pneg %p305
      $region18: #{tpu_custom_call.1} parent=5 // pred_check_branch
        %308 = sbr.rel (%p306) target = $region20
      $region19: #{tpu_custom_call.1} parent=5 // pred_region
        // Predicated region
        $region21: #{tpu_custom_call.1} parent=19 // pred_check
          %p309 = pneg %p103
        $region22: #{tpu_custom_call.1} parent=19 // pred_check_branch
          %311 = sbr.rel (%p309) target = $region24
        $region23: #{tpu_custom_call.1} parent=19 // pred_region
          %s312 = smul.u32 2, %s43
          %p313 = scmp.lt.s32.totalorder %s44, 3
          %s314 = scalar_select %p313, %s44, 3
          %p315 = scmp.lt.s32.totalorder %s312, 1
          %s316 = scalar_select %p315, %s312, 1
          %s317 = smul.addr %s314, 2
          %s318 = sadd.s32 %s316, %s317
          %s319 = smul.addr %s318, 8
          %s320 = scalar_lea.vmem %s4, %s319
          %s321 = smul.u32 2, %s43
        $region24: #{tpu_custom_call.1} parent=19 // pred_fallthru
          _
        // Predicated region
        $region25: #{tpu_custom_call.1} parent=19 // pred_check
          %p322 = pneg %p141
        $region26: #{tpu_custom_call.1} parent=19 // pred_check_branch
          %324 = sbr.rel (%p322) target = $region28
        $region27: #{tpu_custom_call.1} parent=19 // pred_region
          %s325 = sand.u32 %s131, 1
          %s326 = scalar_lea.sflag [#allocation8], %s325
          %s327 = sand.u32 %s131, 1
          %s328 = smul.addr %s327, 128
          %s329 = scalar_lea.vmem [#allocation7], %s328
          %s330 = smul.u32 %s43, 4
          %s331 = sadd.s32 %s330, %s44
          %s332 = sld [smem:[#allocation5 + %s331]]
          %s333 = sadd.s32 %s331, %s45
          %s334 = sld [smem:[#allocation6 + %s333]]
          %s335 = smul.u32 2, %s334
          %s337 = ssub.s32 2048, 2048
          %338 = vsyncadd %s326, %s337
          %s339 = smul.addr %s332, 32
          %s340 = sadd.s32 %s335, %s339
          %s341 = smul.addr %s340, 64
          %s342 = scalar_lea.hbm %s5, %s341
          %s343 = sshll.u32 %s329, 4
          %s344 = int_to_ptr.vmem [resolvable:$true] %s343
          %349 = dma.hbm_to_vmem [thread:$0]  %s342, 2048, %s344, %s326, 128, 128, 8
        $region28: #{tpu_custom_call.1} parent=19 // pred_fallthru
          _
        // Predicated region
        $region29: #{tpu_custom_call.1} parent=19 // pred_check
          %p350 = pneg %p179
        $region30: #{tpu_custom_call.1} parent=19 // pred_check_branch
          %352 = sbr.rel (%p350) target = $region32
        $region31: #{tpu_custom_call.1} parent=19 // pred_region
          %s353 = smul.u32 %s43, 4
          %s354 = sadd.s32 %s353, %s44
          %s355 = sld [smem:[#allocation5 + %s354]]
          %s356 = sadd.s32 %s354, %s45
          %s357 = sld [smem:[#allocation6 + %s356]]
          %s358 = smul.u32 2, %s357
          %p359 = scmp.lt.s32.totalorder %s355, 3
          %s360 = scalar_select %p359, %s355, 3
          %p361 = scmp.lt.s32.totalorder %s358, 1
          %s362 = scalar_select %p361, %s358, 1
          %s363 = smul.addr %s360, 2
          %s364 = sadd.s32 %s362, %s363
          %s365 = scalar_lea.vmem %s6, %s364
          %s366 = smul.u32 %s43, 4
          %s367 = sadd.s32 %s366, %s44
          %s368 = sld [smem:[#allocation5 + %s367]]
          %s369 = sadd.s32 %s367, %s45
          %s370 = sld [smem:[#allocation6 + %s369]]
          %s371 = smul.u32 2, %s370
        $region32: #{tpu_custom_call.1} parent=19 // pred_fallthru
          _
        // Predicated region
        $region33: #{tpu_custom_call.1} parent=19 // pred_check
          %p372 = pneg %p217
        $region34: #{tpu_custom_call.1} parent=19 // pred_check_branch
          %374 = sbr.rel (%p372) target = $region36
        $region35: #{tpu_custom_call.1} parent=19 // pred_region
          %s375 = sand.u32 %s207, 1
          %s376 = scalar_lea.sflag [#allocation11], %s375
          %s377 = sand.u32 %s207, 1
          %s378 = smul.addr %s377, 64
          %s379 = scalar_lea.vmem [#allocation10], %s378
          %s380 = smul.u32 %s43, 4
          %s381 = sadd.s32 %s380, %s44
          %s382 = sld [smem:[#allocation5 + %s381]]
          %s383 = sadd.s32 %s381, %s45
          %s384 = sld [smem:[#allocation6 + %s383]]
          %s385 = smul.u32 16, %s384
          %s387 = ssub.s32 1024, 1024
          %388 = vsyncadd %s376, %s387
          %s389 = smul.addr %s382, 16
          %s390 = sadd.s32 %s385, %s389
          %s391 = smul.addr %s390, 64
          %s392 = scalar_lea.hbm %s7, %s391
          %s393 = sshll.u32 %s379, 4
          %s394 = int_to_ptr.vmem [resolvable:$true] %s393
          %399 = dma.hbm_to_vmem [thread:$0]  %s392, 1024, %s394, %s376, 64, 64, 4
        $region36: #{tpu_custom_call.1} parent=19 // pred_fallthru
          _
        // Predicated region
        $region37: #{tpu_custom_call.1} parent=19 // pred_check
          %p400 = pneg %p249
        $region38: #{tpu_custom_call.1} parent=19 // pred_check_branch
          %402 = sbr.rel (%p400) target = $region40
        $region39: #{tpu_custom_call.1} parent=19 // pred_region
          %s403 = smul.u32 %s43, 4
          %s404 = sadd.s32 %s403, %s44
          %s405 = sld [smem:[#allocation5 + %s404]]
          %p406 = scmp.lt.s32.totalorder %s405, 3
          %s407 = scalar_select %p406, %s405, 3
          %s408 = scalar_lea.vmem %s8, %s407
          %s409 = smul.u32 %s43, 4
          %s410 = sadd.s32 %s409, %s44
          %s411 = sld [smem:[#allocation5 + %s410]]
        $region40: #{tpu_custom_call.1} parent=19 // pred_fallthru
          _
      $region20: #{tpu_custom_call.1} parent=5 // pred_fallthru
        _
      %p412 = scmp.le.s32.totalorder 1, %s36
      %p413 = scmp.lt.s32.totalorder %s36, 5
      %p414 = pnand %p412, %p413
      %p415 = pneg %p414
      // Predicated region
      $region41: #{tpu_custom_call.1} parent=5 // pred_check
        _
      $region42: #{tpu_custom_call.1} parent=5 // pred_check_branch
        %417 = sbr.rel (%p414) target = $region44
      $region43: #{tpu_custom_call.1} parent=5 // pred_region
        %s418 = ssub.s32 %s36, 1
        %s419 = sand.u32 %s134, 1
        %s420 = scalar_lea.sflag [#allocation8], %s419
        %s421 = sand.u32 %s134, 1
        %s422 = smul.addr %s421, 128
        %s423 = scalar_lea.vmem [#allocation7], %s422
        // Predicated region
        $region45: #{tpu_custom_call.1} parent=43 // pred_check
          %p424 = pneg %p147
        $region46: #{tpu_custom_call.1} parent=43 // pred_check_branch
          %426 = sbr.rel (%p424) target = $region48
        $region47: #{tpu_custom_call.1} parent=43 // pred_region
          %427 = dma.done %s420, 2048
        $region48: #{tpu_custom_call.1} parent=43 // pred_fallthru
          _
        %s428 = sand.u32 %s210, 1
        %s429 = scalar_lea.sflag [#allocation11], %s428
        %s430 = sand.u32 %s210, 1
        %s431 = smul.addr %s430, 64
        %s432 = scalar_lea.vmem [#allocation10], %s431
        // Predicated region
        $region49: #{tpu_custom_call.1} parent=43 // pred_check
          %p433 = pneg %p223
        $region50: #{tpu_custom_call.1} parent=43 // pred_check_branch
          %435 = sbr.rel (%p433) target = $region52
        $region51: #{tpu_custom_call.1} parent=43 // pred_region
          %436 = dma.done %s429, 1024
        $region52: #{tpu_custom_call.1} parent=43 // pred_fallthru
          _
        %s437 = smul.u32 2, %s46
        %p438 = scmp.lt.s32.totalorder %s437, 1
        %s439 = scalar_select %p438, %s437, 1
        %s440 = smul.addr %s439, 4
        %s441 = scalar_lea.vmem %s3, %s440
        %p442 = pneg %p81
        %p443 = pneg %p78
        %s444 = smul.u32 2, %s46
        %p445 = scmp.lt.s32.totalorder %s47, 3
        %s446 = scalar_select %p445, %s47, 3
        %p447 = scmp.lt.s32.totalorder %s444, 1
        %s448 = scalar_select %p447, %s444, 1
        %s449 = smul.addr %s446, 2
        %s450 = sadd.s32 %s448, %s449
        %s451 = smul.addr %s450, 8
        %s452 = scalar_lea.vmem %s4, %s451
        %p453 = pneg %p109
        %p454 = pneg %p106
        %s455 = sand.u32 %s134, 1
        %s456 = scalar_lea.sflag [#allocation8], %s455
        %s457 = sand.u32 %s134, 1
        %s458 = smul.addr %s457, 128
        %s459 = scalar_lea.vmem [#allocation7], %s458
        %p460 = pneg %p147
        %p461 = pneg %p144
        %s462 = smul.u32 %s46, 4
        %s463 = sadd.s32 %s462, %s47
        %s464 = sld [smem:[#allocation5 + %s463]]
        %s465 = sadd.s32 %s463, %s48
        %s466 = sld [smem:[#allocation6 + %s465]]
        %s467 = smul.u32 2, %s466
        %p468 = scmp.lt.s32.totalorder %s464, 3
        %s469 = scalar_select %p468, %s464, 3
        %p470 = scmp.lt.s32.totalorder %s467, 1
        %s471 = scalar_select %p470, %s467, 1
        %s472 = smul.addr %s469, 2
        %s473 = sadd.s32 %s471, %s472
        %s474 = scalar_lea.vmem %s6, %s473
        %p475 = pneg %p185
        %p476 = pneg %p182
        %s477 = sand.u32 %s210, 1
        %s478 = scalar_lea.sflag [#allocation11], %s477
        %s479 = sand.u32 %s210, 1
        %s480 = smul.addr %s479, 64
        %s481 = scalar_lea.vmem [#allocation10], %s480
        %p482 = pneg %p223
        %p483 = pneg %p220
        %s484 = smul.u32 %s46, 4
        %s485 = sadd.s32 %s484, %s47
        %s486 = sld [smem:[#allocation5 + %s485]]
        %p487 = scmp.lt.s32.totalorder %s486, 3
        %s488 = scalar_select %p487, %s486, 3
        %s489 = scalar_lea.vmem %s8, %s488
        %p490 = pneg %p255
        %p491 = pneg %p252
        %p492 = pneg %p281
        %p493 = pneg %p278
        %s494 = smul.u32 2, %s46
        %p495 = scmp.lt.s32.totalorder %s494, 1
        %s496 = scalar_select %p495, %s494, 1
        %s497 = smul.addr %s496, 4
        %s498 = scalar_lea.vmem %s3, %s497
        %s499 = smul.u32 2, %s46
        %s500 = smul.u32 2, %s46
        %p501 = scmp.lt.s32.totalorder %s47, 3
        %s502 = scalar_select %p501, %s47, 3
        %p503 = scmp.lt.s32.totalorder %s500, 1
        %s504 = scalar_select %p503, %s500, 1
        %s505 = smul.addr %s502, 2
        %s506 = sadd.s32 %s504, %s505
        %s507 = smul.addr %s506, 8
        %s508 = scalar_lea.vmem %s4, %s507
        %s509 = smul.u32 2, %s46
        %s510 = smul.u32 %s46, 4
        %s511 = sadd.s32 %s510, %s47
        %s512 = sld [smem:[#allocation5 + %s511]]
        %s513 = sadd.s32 %s511, %s48
        %s514 = sld [smem:[#allocation6 + %s513]]
        %s515 = smul.u32 2, %s514
        %s516 = smul.u32 %s46, 4
        %s517 = sadd.s32 %s516, %s47
        %s518 = sld [smem:[#allocation5 + %s517]]
        %s519 = sadd.s32 %s517, %s48
        %s520 = sld [smem:[#allocation6 + %s519]]
        %s521 = smul.u32 2, %s520
        %p522 = scmp.lt.s32.totalorder %s518, 3
        %s523 = scalar_select %p522, %s518, 3
        %p524 = scmp.lt.s32.totalorder %s521, 1
        %s525 = scalar_select %p524, %s521, 1
        %s526 = smul.addr %s523, 2
        %s527 = sadd.s32 %s525, %s526
        %s528 = scalar_lea.vmem %s6, %s527
        %s529 = smul.u32 %s46, 4
        %s530 = sadd.s32 %s529, %s47
        %s531 = sld [smem:[#allocation5 + %s530]]
        %s532 = sadd.s32 %s530, %s48
        %s533 = sld [smem:[#allocation6 + %s532]]
        %s534 = smul.u32 2, %s533
        %s535 = smul.u32 %s46, 4
        %s536 = sadd.s32 %s535, %s47
        %s537 = sld [smem:[#allocation5 + %s536]]
        %s538 = sadd.s32 %s536, %s48
        %s539 = sld [smem:[#allocation6 + %s538]]
        %s540 = smul.u32 16, %s539
        %s541 = smul.u32 %s46, 4
        %s542 = sadd.s32 %s541, %s47
        %s543 = sld [smem:[#allocation5 + %s542]]
        %p544 = scmp.lt.s32.totalorder %s543, 3
        %s545 = scalar_select %p544, %s543, 3
        %s546 = scalar_lea.vmem %s8, %s545
        %s547 = smul.u32 %s46, 4
        %s548 = sadd.s32 %s547, %s47
        %s549 = sld [smem:[#allocation5 + %s548]]
        %s550 = smul.u32 2, %s46
        %p552 = scmp.eq.s32.totalorder %s47, 0
        %p553 = scmp.eq.s32.totalorder %s48, 0
        %p554 = pnand %p552, %p553
        %p555 = pneg %p554
        // Predicated region
        $region53: #{tpu_custom_call.1} parent=43 // pred_check
          _
        $region54: #{tpu_custom_call.1} parent=43 // pred_check_branch
          %557 = sbr.rel (%p554) target = $region56
        $region55: #{tpu_custom_call.1} parent=43 // pred_region
          %558 = vst [vmem:[#allocation2] sm:$0xff] 0.0
          %559 = vst [vmem:[#allocation2 + $0x8] sm:$0xff] 0.0
        $region56: #{tpu_custom_call.1} parent=43 // pred_fallthru
          _
        %s560 = smul.u32 %s46, 4
        %s561 = sadd.s32 %s560, %s47
        %s562 = sld [smem:[#allocation4 + %s561]]
        %p563 = scmp.gt.s32.totalorder %s562, 0
        // Predicated region
        $region57: #{tpu_custom_call.1} parent=43 // pred_check
          %p564 = pneg %p563
        $region58: #{tpu_custom_call.1} parent=43 // pred_check_branch
          %566 = sbr.rel (%p564) target = $region60
        $region59: #{tpu_custom_call.1} parent=43 // pred_region
          %v567 = vld [vmem:[%s498] sm:$0xf]
          %v568 = vld [vmem:[%s498 + $0x4] sm:$0xf]
          %v569 = vld [vmem:[%s423] sm:$0xff]
          %v570 = vld [vmem:[%s423 + $0x8] sm:$0xff]
          %v571 = vld [vmem:[%s423 + $0x10] sm:$0xff]
          %v572 = vld [vmem:[%s423 + $0x18] sm:$0xff]
          %v573 = vld [vmem:[%s423 + $0x20] sm:$0xff]
          %v574 = vld [vmem:[%s423 + $0x28] sm:$0xff]
          %v575 = vld [vmem:[%s423 + $0x30] sm:$0xff]
          %v576 = vld [vmem:[%s423 + $0x38] sm:$0xff]
          %v577 = vld [vmem:[%s423 + $0x40] sm:$0xff]
          %v578 = vld [vmem:[%s423 + $0x48] sm:$0xff]
          %v579 = vld [vmem:[%s423 + $0x50] sm:$0xff]
          %v580 = vld [vmem:[%s423 + $0x58] sm:$0xff]
          %v581 = vld [vmem:[%s423 + $0x60] sm:$0xff]
          %v582 = vld [vmem:[%s423 + $0x68] sm:$0xff]
          %v583 = vld [vmem:[%s423 + $0x70] sm:$0xff]
          %v584 = vld [vmem:[%s423 + $0x78] sm:$0xff]
          %v585 = vld [vmem:[%s528] sm:$0x3]
          %v587 = vlaneseq
          %v588 = vshrl.u32 %v587, 7
          %v589 = vsub.s32 0, %v588
          %v590 = vrot.slane %v585, %v589
          %v591 = vlaneseq
          %v592 = vshrl.u32 %v591, 7
          %v593 = vsub.s32 1, %v592
          %v594 = vrot.slane %v585, %v593
          %v599 = vunpack.c.l.b16 %v567
          %v600 = vunpack.c.l.b16 %v568
          %v601 = vpack.c.b16 %v600, %v599
          %v619 = vunpack.c.l.b16 %v569
          %v620 = vunpack.c.h.b16 %v569
          %v621 = vunpack.c.l.b16 %v570
          %v622 = vunpack.c.h.b16 %v570
          %v623 = vunpack.c.l.b16 %v571
          %v624 = vunpack.c.h.b16 %v571
          %v625 = vunpack.c.l.b16 %v572
          %v626 = vunpack.c.h.b16 %v572
          %v627 = vunpack.c.l.b16 %v573
          %v628 = vunpack.c.h.b16 %v573
          %v629 = vunpack.c.l.b16 %v574
          %v630 = vunpack.c.h.b16 %v574
          %v631 = vunpack.c.l.b16 %v575
          %v632 = vunpack.c.h.b16 %v575
          %v633 = vunpack.c.l.b16 %v576
          %v634 = vunpack.c.h.b16 %v576
          %v635 = vunpack.c.l.b16 %v577
          %v636 = vunpack.c.h.b16 %v577
          %v637 = vunpack.c.l.b16 %v578
          %v638 = vunpack.c.h.b16 %v578
          %v639 = vunpack.c.l.b16 %v579
          %v640 = vunpack.c.h.b16 %v579
          %v641 = vunpack.c.l.b16 %v580
          %v642 = vunpack.c.h.b16 %v580
          %v643 = vunpack.c.l.b16 %v581
          %v644 = vunpack.c.h.b16 %v581
          %v645 = vunpack.c.l.b16 %v582
          %v646 = vunpack.c.h.b16 %v582
          %v647 = vunpack.c.l.b16 %v583
          %v648 = vunpack.c.h.b16 %v583
          %v649 = vunpack.c.l.b16 %v584
          %v650 = vunpack.c.h.b16 %v584
          %v651 = vpack.c.b16 %v621, %v619
          %v652 = vpack.c.b16 %v622, %v620
          %v653 = vpack.c.b16 %v625, %v623
          %v654 = vpack.c.b16 %v626, %v624
          %v655 = vpack.c.b16 %v629, %v627
          %v656 = vpack.c.b16 %v630, %v628
          %v657 = vpack.c.b16 %v633, %v631
          %v658 = vpack.c.b16 %v634, %v632
          %v659 = vpack.c.b16 %v637, %v635
          %v660 = vpack.c.b16 %v638, %v636
          %v661 = vpack.c.b16 %v641, %v639
          %v662 = vpack.c.b16 %v642, %v640
          %v663 = vpack.c.b16 %v645, %v643
          %v664 = vpack.c.b16 %v646, %v644
          %v665 = vpack.c.b16 %v649, %v647
          %v666 = vpack.c.b16 %v650, %v648
          %683 = vmatprep.subr.bf16.mxu0 %v666
          %684 = vmatpush1.bf16.msra.mxu0 %v665
          %685 = vmatprep.subr.bf16.mxu0 %v664
          %686 = vmatpush1.bf16.msra.mxu0 %v663
          %687 = vmatprep.subr.bf16.mxu0 %v662
          %688 = vmatpush1.bf16.msra.mxu0 %v661
          %689 = vmatprep.subr.bf16.mxu0 %v660
          %690 = vmatpush1.bf16.msra.mxu0 %v659
          %691 = vmatprep.subr.bf16.mxu0 %v658
          %692 = vmatpush1.bf16.msra.mxu0 %v657
          %693 = vmatprep.subr.bf16.mxu0 %v656
          %694 = vmatpush1.bf16.msra.mxu0 %v655
          %695 = vmatprep.subr.bf16.mxu0 %v654
          %696 = vmatpush1.bf16.msra.mxu0 %v653
          %697 = vmatprep.subr.bf16.mxu0 %v652
          %698 = vmatpush1.bf16.msra.mxu0 %v651
          %699 = vmatprep.subr.bf16.mxu0 0
          %700 = vmatpush2.bf16.msra.mxu0 0
          %701 = vmatprep.subr.bf16.mxu0 0
          %702 = vmatpush2.bf16.msra.mxu0 0
          %703 = vmatprep.subr.bf16.mxu0 0
          %704 = vmatpush2.bf16.msra.mxu0 0
          %705 = vmatprep.subr.bf16.mxu0 0
          %706 = vmatpush2.bf16.msra.mxu0 0
          %707 = vmatprep.subr.bf16.mxu0 0
          %708 = vmatpush2.bf16.msra.mxu0 0
          %709 = vmatprep.subr.bf16.mxu0 0
          %710 = vmatpush2.bf16.msra.mxu0 0
          %711 = vmatprep.subr.bf16.mxu0 0
          %712 = vmatpush2.bf16.msra.mxu0 0
          %713 = vmatprep.subr.bf16.mxu0 0
          %714 = vmatpush2.bf16.msra.mxu0 0
          %715 = vmatprep.mubr.bf16.mxu0 0
          %716 = vmatmul.mubr.bf16.gmra.mxu0 %v601
          %v717 = vpop.f32.mrf.mxu0
          %v718 = vadd.f32 %v590, %v717
          %v719 = vpop.f32.mrf.mxu0
          %v720 = vadd.f32 %v594, %v719
          %v721 = vpop.f32.mrf.mxu0
          %v722 = vadd.f32 %v590, %v721
          %v723 = vpop.f32.mrf.mxu0
          %v724 = vadd.f32 %v594, %v723
          %725 = vdwg.mxu0
          %v726 = vmul.f32 %v720, 0.5
          %v727 = vmul.f32 %v724, 0.5
          %v728 = vmul.f32 %v720, 0.70710677
          %v729 = vmul.f32 %v724, 0.70710677
          %v730 = verf.f32.pop %v728
          %v731 = verf.f32.pop %v729
          %v732 = vadd.f32 %v730, 1.0
          %v733 = vadd.f32 %v731, 1.0
          %v734 = vmul.f32 %v726, %v732
          %v735 = vmul.f32 %v727, %v733
          %v736 = vmul.f32 %v718, %v734
          %v737 = vmul.f32 %v722, %v735
          %v738 = vpack.c.bf16 %v737, %v736
          %v739 = vld [vmem:[%s432] sm:$0xf]
          %v740 = vld [vmem:[%s432 + $0x4] sm:$0xf]
          %v741 = vld [vmem:[%s432 + $0x8] sm:$0xf]
          %v742 = vld [vmem:[%s432 + $0xc] sm:$0xf]
          %v743 = vld [vmem:[%s432 + $0x10] sm:$0xf]
          %v744 = vld [vmem:[%s432 + $0x14] sm:$0xf]
          %v745 = vld [vmem:[%s432 + $0x18] sm:$0xf]
          %v746 = vld [vmem:[%s432 + $0x1c] sm:$0xf]
          %v747 = vld [vmem:[%s432 + $0x20] sm:$0xf]
          %v748 = vld [vmem:[%s432 + $0x24] sm:$0xf]
          %v749 = vld [vmem:[%s432 + $0x28] sm:$0xf]
          %v750 = vld [vmem:[%s432 + $0x2c] sm:$0xf]
          %v751 = vld [vmem:[%s432 + $0x30] sm:$0xf]
          %v752 = vld [vmem:[%s432 + $0x34] sm:$0xf]
          %v753 = vld [vmem:[%s432 + $0x38] sm:$0xf]
          %v754 = vld [vmem:[%s432 + $0x3c] sm:$0xf]
          %v755 = vld [vmem:[%s546] sm:$0x1]
          %s756 = scalar_select %p553, 1, 0
          %s757 = scvt.s32.f32 %s756
          %v758 = vstv %s757
          %v759 = vmul.f32 %v755, %v758
          %v761 = vlaneseq
          %v762 = vshrl.u32 %v761, 7
          %v763 = vsub.s32 0, %v762
          %v764 = vrot.slane %v759, %v763
          %v782 = vunpack.c.l.b16 %v739
          %v783 = vunpack.c.l.b16 %v740
          %v784 = vunpack.c.l.b16 %v741
          %v785 = vunpack.c.l.b16 %v742
          %v786 = vunpack.c.l.b16 %v743
          %v787 = vunpack.c.l.b16 %v744
          %v788 = vunpack.c.l.b16 %v745
          %v789 = vunpack.c.l.b16 %v746
          %v790 = vunpack.c.l.b16 %v747
          %v791 = vunpack.c.l.b16 %v748
          %v792 = vunpack.c.l.b16 %v749
          %v793 = vunpack.c.l.b16 %v750
          %v794 = vunpack.c.l.b16 %v751
          %v795 = vunpack.c.l.b16 %v752
          %v796 = vunpack.c.l.b16 %v753
          %v797 = vunpack.c.l.b16 %v754
          %v798 = vpack.c.b16 %v783, %v782
          %v799 = vpack.c.b16 %v785, %v784
          %v800 = vpack.c.b16 %v787, %v786
          %v801 = vpack.c.b16 %v789, %v788
          %v802 = vpack.c.b16 %v791, %v790
          %v803 = vpack.c.b16 %v793, %v792
          %v804 = vpack.c.b16 %v795, %v794
          %v805 = vpack.c.b16 %v797, %v796
          %814 = vmatprep.subr.bf16.mxu0 0
          %815 = vmatpush1.bf16.msra.mxu0 %v805
          %816 = vmatprep.subr.bf16.mxu0 0
          %817 = vmatpush1.bf16.msra.mxu0 %v804
          %818 = vmatprep.subr.bf16.mxu0 0
          %819 = vmatpush1.bf16.msra.mxu0 %v803
          %820 = vmatprep.subr.bf16.mxu0 0
          %821 = vmatpush1.bf16.msra.mxu0 %v802
          %822 = vmatprep.subr.bf16.mxu0 0
          %823 = vmatpush1.bf16.msra.mxu0 %v801
          %824 = vmatprep.subr.bf16.mxu0 0
          %825 = vmatpush1.bf16.msra.mxu0 %v800
          %826 = vmatprep.subr.bf16.mxu0 0
          %827 = vmatpush1.bf16.msra.mxu0 %v799
          %828 = vmatprep.subr.bf16.mxu0 0
          %829 = vmatpush1.bf16.msra.mxu0 %v798
          %830 = vmatprep.subr.bf16.mxu0 0
          %831 = vmatpush2.bf16.msra.mxu0 0
          %832 = vmatprep.subr.bf16.mxu0 0
          %833 = vmatpush2.bf16.msra.mxu0 0
          %834 = vmatprep.subr.bf16.mxu0 0
          %835 = vmatpush2.bf16.msra.mxu0 0
          %836 = vmatprep.subr.bf16.mxu0 0
          %837 = vmatpush2.bf16.msra.mxu0 0
          %838 = vmatprep.subr.bf16.mxu0 0
          %839 = vmatpush2.bf16.msra.mxu0 0
          %840 = vmatprep.subr.bf16.mxu0 0
          %841 = vmatpush2.bf16.msra.mxu0 0
          %842 = vmatprep.subr.bf16.mxu0 0
          %843 = vmatpush2.bf16.msra.mxu0 0
          %844 = vmatprep.subr.bf16.mxu0 0
          %845 = vmatpush2.bf16.msra.mxu0 0
          %846 = vmatprep.mubr.bf16.mxu0 0
          %847 = vmatmul.mubr.bf16.gmra.mxu0 %v738
          %v848 = vpop.f32.mrf.mxu0
          %v849 = vadd.f32 %v764, %v848
          %v850 = vpop.f32.mrf.mxu0
          %v851 = vpop.f32.mrf.mxu0
          %v852 = vadd.f32 %v764, %v851
          %v853 = vpop.f32.mrf.mxu0
          %854 = vdwg.mxu0
          %v855 = vld [vmem:[#allocation2] sm:$0xff]
          %v856 = vld [vmem:[#allocation2 + $0x8] sm:$0xff]
          %v857 = vld [vmem:[%s508] sm:$0xff]
          %v858 = vld [vmem:[%s508 + $0x8] sm:$0xff]
          %860 = vset.pattern.permute.xlu0 0
          %861 = vperm.xlu0 %860, %v857
          %v862 = vpop.permute.xlu0 %861
          %865 = vset.pattern.permute.xlu0 0
          %866 = vperm.xlu0 %865, %v858
          %v867 = vpop.permute.xlu0 %866
          %v869 = vmul.f32 %v849, %v862
          %v870 = vmul.f32 %v852, %v867
          %v871 = vadd.f32 %v855, %v869
          %v872 = vadd.f32 %v856, %v870
          %873 = vst [vmem:[#allocation2] sm:$0xff] %v871
          %874 = vst [vmem:[#allocation2 + $0x8] sm:$0xff] %v872
        $region60: #{tpu_custom_call.1} parent=43 // pred_fallthru
          _
        %p875 = scmp.eq.s32.totalorder %s47, 3
        %p876 = pnand %p875, %p553
        %p877 = pneg %p876
        // Predicated region
        $region61: #{tpu_custom_call.1} parent=43 // pred_check
          _
        $region62: #{tpu_custom_call.1} parent=43 // pred_check_branch
          %879 = sbr.rel (%p876) target = $region64
        $region63: #{tpu_custom_call.1} parent=43 // pred_region
          %v880 = vld [vmem:[#allocation2] sm:$0xff]
          %v881 = vld [vmem:[#allocation2 + $0x8] sm:$0xff]
          %882 = vst [vmem:[#allocation12] sm:$0xff] %v880
          %883 = vst [vmem:[#allocation12 + $0x8] sm:$0xff] %v881
        $region64: #{tpu_custom_call.1} parent=43 // pred_fallthru
          _
        // Predicated region
        $region65: #{tpu_custom_call.1} parent=43 // pred_check
          %p884 = pneg %p278
        $region66: #{tpu_custom_call.1} parent=43 // pred_check_branch
          %886 = sbr.rel (%p884) target = $region68
        $region67: #{tpu_custom_call.1} parent=43 // pred_region
          %s887 = smul.u32 2, %s46
          %s889 = ssub.s32 256, 256
          %890 = vsyncadd [#allocation9], %s889
          %s891 = smul.addr %s887, 128
          %s892 = scalar_lea.hbm %s9, %s891
          %s893 = sshll.u32 [#allocation12], 4
          %s894 = int_to_ptr.vmem [resolvable:$true] %s893
          %899 = dma.vmem_to_hbm [thread:$0]  %s894, 256, %s892, [#allocation9], 128, 128, 8
        $region68: #{tpu_custom_call.1} parent=43 // pred_fallthru
          _
        // Predicated region
        $region69: #{tpu_custom_call.1} parent=43 // pred_check
          %p900 = pneg %p278
        $region70: #{tpu_custom_call.1} parent=43 // pred_check_branch
          %902 = sbr.rel (%p900) target = $region72
        $region71: #{tpu_custom_call.1} parent=43 // pred_region
          %903 = dma.done [#allocation9], 256
        $region72: #{tpu_custom_call.1} parent=43 // pred_fallthru
          _
      $region44: #{tpu_custom_call.1} parent=5 // pred_fallthru
        _
      %p904 = scmp.le.s32.totalorder 2, %s36
      // Predicated region
      $region73: #{tpu_custom_call.1} parent=5 // pred_check
        %p905 = pneg %p904
      $region74: #{tpu_custom_call.1} parent=5 // pred_check_branch
        %907 = sbr.rel (%p905) target = $region76
      $region75: #{tpu_custom_call.1} parent=5 // pred_region
        %s908 = ssub.s32 %s36, 2
      $region76: #{tpu_custom_call.1} parent=5 // pred_fallthru
        _
    $region6: #{tpu_custom_call.1} parent=1 // loop_footer
      %s40 = sadd.s32 1, %s36
    $region7: #{tpu_custom_call.1} parent=1 // loop_footer_branch
      %35 = sbr.rel target = $region3
    $region8: #{tpu_custom_call.1} parent=1 // loop_exit
      _
    %909 = vsyncpa [#allocation8], 1
    %s910 = scalar_lea.sflag [#allocation8], 1
    %911 = vsyncpa %s910, 1
    %912 = vsyncpa [#allocation11], 1
    %s913 = scalar_lea.sflag [#allocation11], 1
    %914 = vsyncpa %s913, 1
    %915 = vsyncpa [#allocation9], 1
    %s916 = scalar_lea.sflag [#allocation9], 1
    %917 = vsyncpa %s916, 1

</llo_original>
